<compile_context>
chip_gen: v5e
topology: v5e:2x2
jax: 0.10.0
libtpu: 0.0.40
codegen_flags: <defaults>
</compile_context>

<pallas_src>
import jax
import jax.numpy as jnp
from jax.experimental import pallas as pl
from jax.experimental.pallas import tpu as pltpu

BN_EPS = 1e-5


# ----------------------------------------------------------------------------
# Kernel: 3 matmuls (MXU) + bias/ReLU (VPU) + sigmoid (EUP), all in VMEM.
# ----------------------------------------------------------------------------
def _decoder_kernel(z_ref, w1_ref, b1_ref, w2_ref, b2_ref, w3_ref, b3_ref, o_ref):
    # Layer 1: Linear (BN folded in) -> ReLU
    h = jnp.dot(z_ref[...], w1_ref[...], preferred_element_type=jnp.float32)
    h = jnp.maximum(h + b1_ref[...], 0.0)
    # Layer 2: Linear (BN folded in) -> ReLU
    h = jnp.dot(h, w2_ref[...], preferred_element_type=jnp.float32)
    h = jnp.maximum(h + b2_ref[...], 0.0)
    # Layer 3: Linear -> Sigmoid
    h = jnp.dot(h, w3_ref[...], preferred_element_type=jnp.float32)
    o_ref[...] = jax.nn.sigmoid(h + b3_ref[...])


# ----------------------------------------------------------------------------
# Trace-time helpers (run as ordinary XLA ops, once per call).
# ----------------------------------------------------------------------------
def _round_up(x, m):
    return ((x + m - 1) // m) * m


def _pad_to(a, shape):
    widths = [(0, s - d) for d, s in zip(a.shape, shape)]
    if all(w == (0, 0) for w in widths):
        return a
    return jnp.pad(a, widths)


def _fold_bn(w, b, gamma, beta, mean, var):
    """Fold eval-mode BatchNorm1d + Linear bias into (W', b')."""
    s = gamma * jax.lax.rsqrt(var + BN_EPS)        # (1, F)
    return w * s, (b - mean) * s + beta


def decoder_forward(z, params, *, tile_b=128):
    """Full decoder MLP in one batch-tiled Pallas kernel."""
    (w1, b1, g1, be1, m1, v1,
     w2, b2, g2, be2, m2, v2,
     w3, b3) = params
    B, dim_in = z.shape
    hidden = w1.shape[1]
    dim_out = w3.shape[1]

    # --- Fold BN + bias into the first two Linear layers (7 operands total) ---
    w1f, b1f = _fold_bn(w1, b1, g1, be1, m1, v1)
    w2f, b2f = _fold_bn(w2, b2, g2, be2, m2, v2)

    # --- Pad hidden width to a lane-dense multiple of 128 (math unchanged) ---
    hp = _round_up(hidden, 128)
    w1f = _pad_to(w1f, (dim_in, hp))
    b1f = _pad_to(b1f, (1, hp))
    w2f = _pad_to(w2f, (hp, hp))
    b2f = _pad_to(b2f, (1, hp))
    w3p = _pad_to(w3, (hp, dim_out))

    # --- Batch tiling: TILE_B multiple of 8, pad batch to a whole grid ---
    tile_b = max(8, _round_up(min(tile_b, _round_up(B, 8)), 8))
    Bp = _round_up(B, tile_b)
    zp = _pad_to(z, (Bp, dim_in))
    grid = (Bp // tile_b,)

    in_specs = [
        pl.BlockSpec((tile_b, dim_in), lambda i: (i, 0)),   # z tile moves with grid
        pl.BlockSpec((dim_in, hp),     lambda i: (0, 0)),   # weights resident
        pl.BlockSpec((1, hp),          lambda i: (0, 0)),
        pl.BlockSpec((hp, hp),         lambda i: (0, 0)),
        pl.BlockSpec((1, hp),          lambda i: (0, 0)),
        pl.BlockSpec((hp, dim_out),    lambda i: (0, 0)),
        pl.BlockSpec((1, dim_out),     lambda i: (0, 0)),
    ]
    out_specs = pl.BlockSpec((tile_b, dim_out), lambda i: (i, 0))

    # Advisory cost hint for XLA's scheduler.
    flops = 2 * Bp * (dim_in * hp + hp * hp + hp * dim_out)
    transcendentals = Bp * dim_out  # sigmoid
    bytes_accessed = 4 * (zp.size + Bp * dim_out
                          + w1f.size + b1f.size + w2f.size + b2f.size
                          + w3p.size + b3.size)

    out = pl.pallas_call(
        _decoder_kernel,
        out_shape=jax.ShapeDtypeStruct((Bp, dim_out), jnp.float32),
        grid=grid,
        in_specs=in_specs,
        out_specs=out_specs,
        compiler_params=pltpu.CompilerParams(
            dimension_semantics=("parallel",)),
        cost_estimate=pl.CostEstimate(
            flops=int(flops),
            transcendentals=int(transcendentals),
            bytes_accessed=int(bytes_accessed)),
    )(zp, w1f, b1f, w2f, b2f, w3p, b3)

    return out[:B]


# ----------------------------------------------------------------------------
# Deterministic synthetic parameters (shapes match the PyTorch module).
# ----------------------------------------------------------------------------
def make_params(key, dim_in, hidden, dim_out):
    ks = jax.random.split(key, 8)

    def lin(k, fan_in, fan_out):
        scale = 1.0 / jnp.sqrt(jnp.float32(fan_in))
        kw, kb = jax.random.split(k)
        w = jax.random.uniform(kw, (fan_in, fan_out), jnp.float32, -scale, scale)
        b = jax.random.uniform(kb, (1, fan_out), jnp.float32, -scale, scale)
        return w, b

    def bn(k, feat):
        kg, kb, km, kv = jax.random.split(k, 4)
        gamma = 1.0 + 0.1 * jax.random.normal(kg, (1, feat), jnp.float32)
        beta = 0.1 * jax.random.normal(kb, (1, feat), jnp.float32)
        mean = 0.1 * jax.random.normal(km, (1, feat), jnp.float32)
        var = jnp.abs(1.0 + 0.1 * jax.random.normal(kv, (1, feat), jnp.float32))
        return gamma, beta, mean, var

    w1, b1 = lin(ks[0], dim_in, hidden)
    g1, be1, m1, v1 = bn(ks[1], hidden)
    w2, b2 = lin(ks[2], hidden, hidden)
    g2, be2, m2, v2 = bn(ks[3], hidden)
    w3, b3 = lin(ks[4], hidden, dim_out)
    return (w1, b1, g1, be1, m1, v1,
            w2, b2, g2, be2, m2, v2,
            w3, b3)


def decoder_reference(z, params):
    """Pure-JAX reference of the same forward pass (unfolded BN, eval mode)."""
    (w1, b1, g1, be1, m1, v1,
     w2, b2, g2, be2, m2, v2,
     w3, b3) = params
    h = z @ w1 + b1
    h = g1 * (h - m1) * jax.lax.rsqrt(v1 + BN_EPS) + be1
    h = jnp.maximum(h, 0.0)
    h = h @ w2 + b2
    h = g2 * (h - m2) * jax.lax.rsqrt(v2 + BN_EPS) + be2
    h = jnp.maximum(h, 0.0)
    return jax.nn.sigmoid(h @ w3 + b3)


if __name__ == "__main__":
    # Small shapes consistent with the e2c decoder:
    # latent z: (batch, dim_in); output: flattened image (batch, dim_out = 16*16).
    B, DIM_IN, HIDDEN, DIM_OUT = 16, 8, 32, 256

    key = jax.random.PRNGKey(0)
    kz, kp = jax.random.split(key)
    z = jax.random.normal(kz, (B, DIM_IN), jnp.float32)
    params = make_params(kp, DIM_IN, HIDDEN, DIM_OUT)

    # tile_b=8 -> grid=(2,) so the batch pipeline is actually exercised.
    out = decoder_forward(z, params, tile_b=8)
    out = jax.block_until_ready(out)

    ref = decoder_reference(z, params)
    assert out.shape == (B, DIM_OUT)
    assert jnp.max(jnp.abs(out - ref)) < 1e-4

    print("KERNEL_OK")
</pallas_src>

<mosaic_0001>
module attributes {stable_mosaic.version = 11 : i64} {
  func.func @_decoder_kernel(%arg0: i32, %arg1: memref<8x8xf32, #tpu.memory_space<vmem>>, %arg2: memref<8x128xf32, #tpu.memory_space<vmem>>, %arg3: memref<1x128xf32, #tpu.memory_space<vmem>>, %arg4: memref<128x128xf32, #tpu.memory_space<vmem>>, %arg5: memref<1x128xf32, #tpu.memory_space<vmem>>, %arg6: memref<128x256xf32, #tpu.memory_space<vmem>>, %arg7: memref<1x256xf32, #tpu.memory_space<vmem>>, %arg8: memref<8x256xf32, #tpu.memory_space<vmem>>) attributes {dimension_semantics = [#tpu.dimension_semantics<parallel>], iteration_bounds = array<i64: 2>, scalar_prefetch = 0 : i64, scratch_operands = 0 : i64, tpu.core_type = #tpu.core_type<tc>, window_params = [{transform_indices = @transform_0, window_bounds = array<i64: 8, 8>}, {pipeline_mode = #tpu.pipeline_mode<synchronous>, transform_indices = @transform_1, window_bounds = array<i64: 8, 128>}, {pipeline_mode = #tpu.pipeline_mode<synchronous>, transform_indices = @transform_2, window_bounds = array<i64: 1, 128>}, {pipeline_mode = #tpu.pipeline_mode<synchronous>, transform_indices = @transform_3, window_bounds = array<i64: 128, 128>}, {pipeline_mode = #tpu.pipeline_mode<synchronous>, transform_indices = @transform_4, window_bounds = array<i64: 1, 128>}, {pipeline_mode = #tpu.pipeline_mode<synchronous>, transform_indices = @transform_5, window_bounds = array<i64: 128, 256>}, {pipeline_mode = #tpu.pipeline_mode<synchronous>, transform_indices = @transform_6, window_bounds = array<i64: 1, 256>}, {transform_indices = @transform_7, window_bounds = array<i64: 8, 256>}]} {
    %c0 = arith.constant 0 : index
    %c0_0 = arith.constant 0 : index
    %0 = vector.load %arg1[%c0, %c0_0] : memref<8x8xf32, #tpu.memory_space<vmem>>, vector<8x8xf32>
    %c0_1 = arith.constant 0 : index
    %c0_2 = arith.constant 0 : index
    %1 = vector.load %arg2[%c0_1, %c0_2] : memref<8x128xf32, #tpu.memory_space<vmem>>, vector<8x128xf32>
    %cst = arith.constant dense<0.000000e+00> : vector<8x128xf32>
    %2 = tpu.matmul %0, %1, %cst {dimension_numbers = #tpu.dot_dimension_numbers<[1], [0], [0], [1], [0, 0, 1, 1], [], []>} : vector<8x8xf32>, vector<8x128xf32>, vector<8x128xf32> -> vector<8x128xf32>
    %c0_3 = arith.constant 0 : index
    %c0_4 = arith.constant 0 : index
    %3 = vector.load %arg3[%c0_3, %c0_4] : memref<1x128xf32, #tpu.memory_space<vmem>>, vector<1x128xf32>
    %4 = vector.broadcast %3 : vector<1x128xf32> to vector<8x128xf32>
    %5 = arith.addf %2, %4 : vector<8x128xf32>
    %cst_5 = arith.constant 0.000000e+00 : f32
    %6 = vector.broadcast %cst_5 : f32 to vector<8x128xf32>
    %7 = arith.maximumf %5, %6 : vector<8x128xf32>
    %c0_6 = arith.constant 0 : index
    %c0_7 = arith.constant 0 : index
    %8 = vector.load %arg4[%c0_6, %c0_7] : memref<128x128xf32, #tpu.memory_space<vmem>>, vector<128x128xf32>
    %cst_8 = arith.constant dense<0.000000e+00> : vector<8x128xf32>
    %9 = tpu.matmul %7, %8, %cst_8 {dimension_numbers = #tpu.dot_dimension_numbers<[1], [0], [0], [1], [0, 0, 1, 1], [], []>} : vector<8x128xf32>, vector<128x128xf32>, vector<8x128xf32> -> vector<8x128xf32>
    %c0_9 = arith.constant 0 : index
    %c0_10 = arith.constant 0 : index
    %10 = vector.load %arg5[%c0_9, %c0_10] : memref<1x128xf32, #tpu.memory_space<vmem>>, vector<1x128xf32>
    %11 = vector.broadcast %10 : vector<1x128xf32> to vector<8x128xf32>
    %12 = arith.addf %9, %11 : vector<8x128xf32>
    %cst_11 = arith.constant 0.000000e+00 : f32
    %13 = vector.broadcast %cst_11 : f32 to vector<8x128xf32>
    %14 = arith.maximumf %12, %13 : vector<8x128xf32>
    %c0_12 = arith.constant 0 : index
    %c0_13 = arith.constant 0 : index
    %15 = vector.load %arg6[%c0_12, %c0_13] : memref<128x256xf32, #tpu.memory_space<vmem>>, vector<128x256xf32>
    %cst_14 = arith.constant dense<0.000000e+00> : vector<8x256xf32>
    %16 = tpu.matmul %14, %15, %cst_14 {dimension_numbers = #tpu.dot_dimension_numbers<[1], [0], [0], [1], [0, 0, 1, 1], [], []>} : vector<8x128xf32>, vector<128x256xf32>, vector<8x256xf32> -> vector<8x256xf32>
    %c0_15 = arith.constant 0 : index
    %c0_16 = arith.constant 0 : index
    %17 = vector.load %arg7[%c0_15, %c0_16] : memref<1x256xf32, #tpu.memory_space<vmem>>, vector<1x256xf32>
    %18 = vector.broadcast %17 : vector<1x256xf32> to vector<8x256xf32>
    %19 = arith.addf %16, %18 : vector<8x256xf32>
    %20 = arith.negf %19 : vector<8x256xf32>
    %21 = math.exp %20 : vector<8x256xf32>
    %cst_17 = arith.constant 1.000000e+00 : f32
    %22 = vector.broadcast %cst_17 : f32 to vector<8x256xf32>
    %23 = arith.addf %22, %21 : vector<8x256xf32>
    %24 = arith.divf %22, %23 : vector<8x256xf32>
    %c0_18 = arith.constant 0 : index
    %c0_19 = arith.constant 0 : index
    %25 = vector.load %arg8[%c0_18, %c0_19] : memref<8x256xf32, #tpu.memory_space<vmem>>, vector<8x256xf32>
    tpu.vector_store %arg8[%c0_18, %c0_19], %24 {strides = array<i32>} : memref<8x256xf32, #tpu.memory_space<vmem>>, vector<8x256xf32>,
    return
  }
  func.func @transform_0(%arg0: i32) -> (i32, i32) {
    %c0_i32 = arith.constant 0 : i32
    %c0_i32_0 = arith.constant 0 : i32
    return %arg0, %c0_i32 : i32, i32
  }
  func.func @transform_1(%arg0: i32) -> (i32, i32) {
    %c0_i32 = arith.constant 0 : i32
    %c0_i32_0 = arith.constant 0 : i32
    %c0_i32_1 = arith.constant 0 : i32
    return %c0_i32, %c0_i32_0 : i32, i32
  }
  func.func @transform_2(%arg0: i32) -> (i32, i32) {
    %c0_i32 = arith.constant 0 : i32
    %c0_i32_0 = arith.constant 0 : i32
    %c0_i32_1 = arith.constant 0 : i32
    return %c0_i32, %c0_i32_0 : i32, i32
  }
  func.func @transform_3(%arg0: i32) -> (i32, i32) {
    %c0_i32 = arith.constant 0 : i32
    %c0_i32_0 = arith.constant 0 : i32
    %c0_i32_1 = arith.constant 0 : i32
    return %c0_i32, %c0_i32_0 : i32, i32
  }
  func.func @transform_4(%arg0: i32) -> (i32, i32) {
    %c0_i32 = arith.constant 0 : i32
    %c0_i32_0 = arith.constant 0 : i32
    %c0_i32_1 = arith.constant 0 : i32
    return %c0_i32, %c0_i32_0 : i32, i32
  }
  func.func @transform_5(%arg0: i32) -> (i32, i32) {
    %c0_i32 = arith.constant 0 : i32
    %c0_i32_0 = arith.constant 0 : i32
    %c0_i32_1 = arith.constant 0 : i32
    return %c0_i32, %c0_i32_0 : i32, i32
  }
  func.func @transform_6(%arg0: i32) -> (i32, i32) {
    %c0_i32 = arith.constant 0 : i32
    %c0_i32_0 = arith.constant 0 : i32
    %c0_i32_1 = arith.constant 0 : i32
    return %c0_i32, %c0_i32_0 : i32, i32
  }
  func.func @transform_7(%arg0: i32) -> (i32, i32) {
    %c0_i32 = arith.constant 0 : i32
    %c0_i32_0 = arith.constant 0 : i32
    return %arg0, %c0_i32 : i32, i32
  }
}

</mosaic_0001>

<llo_original>
// kernel: tpu_custom_call.1
$region0: #{tpu_custom_call.1}
  #allocation0 [shape = 'u32[]', space=smem, size = 0x4, offset = 0x4, fixed_abs, tag = 'smem constant byte address 0x4 - core index']
  #allocation1 [shape = 'u32[72,128]{1,0:T(1,128)}', space=vmem, size = 0x9000, scoped, tag = 'internal scratch']
  %s0 = inlined_call_operand.vmem [shape: f32[16,8], index: 0, kind: input, shape index: {}]
  %s1 = inlined_call_operand.vmem [shape: f32[8,128], index: 1, kind: input, shape index: {}]
  %s2 = inlined_call_operand.vmem [shape: f32[1,128], index: 2, kind: input, shape index: {}]
  %s3 = inlined_call_operand.hbm [shape: f32[128,128], index: 3, kind: input, shape index: {}]
  %s4 = inlined_call_operand.vmem [shape: f32[1,128], index: 4, kind: input, shape index: {}]
  %s5 = inlined_call_operand.hbm [shape: f32[128,256], index: 5, kind: input, shape index: {}]
  %s6 = inlined_call_operand.vmem [shape: f32[1,256], index: 6, kind: input, shape index: {}]
  %s7 = inlined_call_operand.hbm [shape: f32[16,256], index: 7, kind: output, shape index: {}]
  %s8 = sld [smem:[#allocation0]]
  $region69: #{tpu_custom_call.1} parent=0
    _
  %s10 = ssub.s32 1, %s8
  %s11 = scalar_select 0, %s10, %s8
  $region1: #{tpu_custom_call.1} parent=0
    #allocation2 [shape = 'u8[65536]{0}', space=vmem, size = 0x10000, scoped, tag = 'input window, operand 3, single buffered']
    #allocation3 [shape = 's32[2]{0}', space=sflag, size = 0x8, scoped, tag = 'scoped memory for tpu_custom_call.1']
    #allocation4 [shape = 's32[2]{0}', space=sflag, size = 0x8, scoped, tag = 'scoped memory for tpu_custom_call.1']
    #allocation5 [shape = 'u8[131072]{0}', space=vmem, size = 0x20000, scoped, tag = 'input window, operand 5, single buffered']
    #allocation6 [shape = 's32[1]{0}', space=sflag, size = 0x4, scoped, tag = 'scoped memory for tpu_custom_call.1']
    #allocation7 [shape = 'u8[16384]{0}', space=vmem, size = 0x4000, scoped, tag = 'output window, operand 0']
    %12 = vsyncpa [#allocation3], 0
    %13 = vsyncpa [#allocation6], 0
    %14 = vsyncpa [#allocation4], 0
    %s15 = scalar_lea.sflag [#allocation4], 1
    %16 = vsyncpa %s15, 0
    loop: start=0, step=1, limit=4
    $region2: #{tpu_custom_call.1} parent=1 // loop_pre_header
      _
    $region3: #{tpu_custom_call.1} parent=1 // loop_header
      %s18 = sphi 0, %s22
      %p19 = scmp.ge.s32.totalorder %s18, 4
      %s28 = sphi 0, %s30
      %s31 = sphi 0, %s28
      %s32 = sphi 0, %s31
      %s48 = sphi 0, %s32
      %s52 = sphi 0, %s52
      %s54 = sphi 0, %s52
      %s55 = sphi 0, %s54
      %s69 = sphi 0, %s55
      %s73 = sphi 0, %s73
      %s75 = sphi 0, %s73
      %s76 = sphi 0, %s75
      %s90 = sphi 0, %s76
      %s94 = sphi 0, %s94
      %s96 = sphi 0, %s94
      %s97 = sphi 0, %s96
      %s111 = sphi 0, %s97
      %s115 = sphi 0, %s115
      %s117 = sphi 0, %s115
      %s118 = sphi 0, %s117
      %s132 = sphi 0, %s118
      %s136 = sphi 0, %s136
      %s138 = sphi 0, %s136
      %s139 = sphi 0, %s138
      %s153 = sphi 0, %s139
      %s157 = sphi 0, %s157
      %s159 = sphi 0, %s157
      %s160 = sphi 0, %s159
      %s174 = sphi 0, %s160
      %s180 = sphi 0, %s182
      %s183 = sphi 0, %s180
      %s184 = sphi 0, %s183
      %s200 = sphi 0, %s184
    $region4: #{tpu_custom_call.1} parent=1 // loop_header_branch
      %21 = sbr.rel (%p19) target = $region8
    $region5: #{tpu_custom_call.1} parent=1 // loop_body
      %s23 = ssub.s32 %s18, 1
      %s24 = ssub.s32 %s18, 2
      %s25 = sadd.s32 %s18, 1
      %s26 = ssub.s32 %s18, %s25
      %p27 = scmp.eq.s32.totalorder %s26, 0
      %s29 = sadd.s32 %s28, 1
      %s30 = scalar_select %p27, %s28, %s29
      %p33 = pneg %p27
      %p34 = scmp.eq.s32.totalorder %s18, 1
      %p35 = por %p33, %p34
      %p36 = scmp.ne.s32.totalorder %s28, %s31
      %p37 = scmp.eq.s32.totalorder %s18, 0
      %p38 = por %p36, %p37
      %p39 = scmp.ne.s32.totalorder %s28, %s31
      %p40 = scmp.eq.s32.totalorder %s23, 1
      %p41 = por %p39, %p40
      %p42 = scmp.ne.s32.totalorder %s31, %s32
      %p43 = scmp.eq.s32.totalorder %s23, 0
      %p44 = por %p42, %p43
      %p45 = scmp.ne.s32.totalorder %s31, %s32
      %p46 = scmp.eq.s32.totalorder %s24, 1
      %p47 = por %p45, %p46
      %p49 = scmp.ne.s32.totalorder %s32, %s48
      %p50 = scmp.eq.s32.totalorder %s24, 0
      %p51 = por %p49, %p50
      %s53 = sadd.s32 %s52, 1
      %p56 = scmp.eq.s32.totalorder %s18, 1
      %p57 = scmp.ne.s32.totalorder %s52, %s54
      %p58 = scmp.eq.s32.totalorder %s18, 0
      %p59 = por %p57, %p58
      %p60 = scmp.ne.s32.totalorder %s52, %s54
      %p61 = scmp.eq.s32.totalorder %s23, 1
      %p62 = por %p60, %p61
      %p63 = scmp.ne.s32.totalorder %s54, %s55
      %p64 = scmp.eq.s32.totalorder %s23, 0
      %p65 = por %p63, %p64
      %p66 = scmp.ne.s32.totalorder %s54, %s55
      %p67 = scmp.eq.s32.totalorder %s24, 1
      %p68 = por %p66, %p67
      %p70 = scmp.ne.s32.totalorder %s55, %s69
      %p71 = scmp.eq.s32.totalorder %s24, 0
      %p72 = por %p70, %p71
      %s74 = sadd.s32 %s73, 1
      %p77 = scmp.eq.s32.totalorder %s18, 1
      %p78 = scmp.ne.s32.totalorder %s73, %s75
      %p79 = scmp.eq.s32.totalorder %s18, 0
      %p80 = por %p78, %p79
      %p81 = scmp.ne.s32.totalorder %s73, %s75
      %p82 = scmp.eq.s32.totalorder %s23, 1
      %p83 = por %p81, %p82
      %p84 = scmp.ne.s32.totalorder %s75, %s76
      %p85 = scmp.eq.s32.totalorder %s23, 0
      %p86 = por %p84, %p85
      %p87 = scmp.ne.s32.totalorder %s75, %s76
      %p88 = scmp.eq.s32.totalorder %s24, 1
      %p89 = por %p87, %p88
      %p91 = scmp.ne.s32.totalorder %s76, %s90
      %p92 = scmp.eq.s32.totalorder %s24, 0
      %p93 = por %p91, %p92
      %s95 = sadd.s32 %s94, 1
      %p98 = scmp.eq.s32.totalorder %s18, 1
      %p99 = scmp.ne.s32.totalorder %s94, %s96
      %p100 = scmp.eq.s32.totalorder %s18, 0
      %p101 = por %p99, %p100
      %p102 = scmp.ne.s32.totalorder %s94, %s96
      %p103 = scmp.eq.s32.totalorder %s23, 1
      %p104 = por %p102, %p103
      %p105 = scmp.ne.s32.totalorder %s96, %s97
      %p106 = scmp.eq.s32.totalorder %s23, 0
      %p107 = por %p105, %p106
      %p108 = scmp.ne.s32.totalorder %s96, %s97
      %p109 = scmp.eq.s32.totalorder %s24, 1
      %p110 = por %p108, %p109
      %p112 = scmp.ne.s32.totalorder %s97, %s111
      %p113 = scmp.eq.s32.totalorder %s24, 0
      %p114 = por %p112, %p113
      %s116 = sadd.s32 %s115, 1
      %p119 = scmp.eq.s32.totalorder %s18, 1
      %p120 = scmp.ne.s32.totalorder %s115, %s117
      %p121 = scmp.eq.s32.totalorder %s18, 0
      %p122 = por %p120, %p121
      %p123 = scmp.ne.s32.totalorder %s115, %s117
      %p124 = scmp.eq.s32.totalorder %s23, 1
      %p125 = por %p123, %p124
      %p126 = scmp.ne.s32.totalorder %s117, %s118
      %p127 = scmp.eq.s32.totalorder %s23, 0
      %p128 = por %p126, %p127
      %p129 = scmp.ne.s32.totalorder %s117, %s118
      %p130 = scmp.eq.s32.totalorder %s24, 1
      %p131 = por %p129, %p130
      %p133 = scmp.ne.s32.totalorder %s118, %s132
      %p134 = scmp.eq.s32.totalorder %s24, 0
      %p135 = por %p133, %p134
      %s137 = sadd.s32 %s136, 1
      %p140 = scmp.eq.s32.totalorder %s18, 1
      %p141 = scmp.ne.s32.totalorder %s136, %s138
      %p142 = scmp.eq.s32.totalorder %s18, 0
      %p143 = por %p141, %p142
      %p144 = scmp.ne.s32.totalorder %s136, %s138
      %p145 = scmp.eq.s32.totalorder %s23, 1
      %p146 = por %p144, %p145
      %p147 = scmp.ne.s32.totalorder %s138, %s139
      %p148 = scmp.eq.s32.totalorder %s23, 0
      %p149 = por %p147, %p148
      %p150 = scmp.ne.s32.totalorder %s138, %s139
      %p151 = scmp.eq.s32.totalorder %s24, 1
      %p152 = por %p150, %p151
      %p154 = scmp.ne.s32.totalorder %s139, %s153
      %p155 = scmp.eq.s32.totalorder %s24, 0
      %p156 = por %p154, %p155
      %s158 = sadd.s32 %s157, 1
      %p161 = scmp.eq.s32.totalorder %s18, 1
      %p162 = scmp.ne.s32.totalorder %s157, %s159
      %p163 = scmp.eq.s32.totalorder %s18, 0
      %p164 = por %p162, %p163
      %p165 = scmp.ne.s32.totalorder %s157, %s159
      %p166 = scmp.eq.s32.totalorder %s23, 1
      %p167 = por %p165, %p166
      %p168 = scmp.ne.s32.totalorder %s159, %s160
      %p169 = scmp.eq.s32.totalorder %s23, 0
      %p170 = por %p168, %p169
      %p171 = scmp.ne.s32.totalorder %s159, %s160
      %p172 = scmp.eq.s32.totalorder %s24, 1
      %p173 = por %p171, %p172
      %p175 = scmp.ne.s32.totalorder %s160, %s174
      %p176 = scmp.eq.s32.totalorder %s24, 0
      %p177 = por %p175, %p176
      %s178 = ssub.s32 %s18, %s25
      %p179 = scmp.eq.s32.totalorder %s178, 0
      %s181 = sadd.s32 %s180, 1
      %s182 = scalar_select %p179, %s180, %s181
      %p185 = pneg %p179
      %p186 = scmp.eq.s32.totalorder %s18, 1
      %p187 = por %p185, %p186
      %p188 = scmp.ne.s32.totalorder %s180, %s183
      %p189 = scmp.eq.s32.totalorder %s18, 0
      %p190 = por %p188, %p189
      %p191 = scmp.ne.s32.totalorder %s180, %s183
      %p192 = scmp.eq.s32.totalorder %s23, 1
      %p193 = por %p191, %p192
      %p194 = scmp.ne.s32.totalorder %s183, %s184
      %p195 = scmp.eq.s32.totalorder %s23, 0
      %p196 = por %p194, %p195
      %p197 = scmp.ne.s32.totalorder %s183, %s184
      %p198 = scmp.eq.s32.totalorder %s24, 1
      %p199 = por %p197, %p198
      %p201 = scmp.ne.s32.totalorder %s184, %s200
      %p202 = scmp.eq.s32.totalorder %s24, 0
      %p203 = por %p201, %p202
      %p204 = scmp.le.s32.totalorder 1, %s18
      %p205 = scmp.lt.s32.totalorder %s18, 3
      %p206 = pnand %p204, %p205
      %p207 = pneg %p206
      // Predicated region
      $region9: #{tpu_custom_call.1} parent=5 // pred_check
        _
      $region10: #{tpu_custom_call.1} parent=5 // pred_check_branch
        %209 = sbr.rel (%p206) target = $region12
      $region11: #{tpu_custom_call.1} parent=5 // pred_region
        %s210 = ssub.s32 %s18, 1
        // Predicated region
        $region13: #{tpu_custom_call.1} parent=11 // pred_check
          %p211 = pneg %p65
        $region14: #{tpu_custom_call.1} parent=11 // pred_check_branch
          %213 = sbr.rel (%p211) target = $region16
        $region15: #{tpu_custom_call.1} parent=11 // pred_region
          _
        $region16: #{tpu_custom_call.1} parent=11 // pred_fallthru
          _
        // Predicated region
        $region17: #{tpu_custom_call.1} parent=11 // pred_check
          %p214 = pneg %p86
        $region18: #{tpu_custom_call.1} parent=11 // pred_check_branch
          %216 = sbr.rel (%p214) target = $region20
        $region19: #{tpu_custom_call.1} parent=11 // pred_region
          _
        $region20: #{tpu_custom_call.1} parent=11 // pred_fallthru
          _
        // Predicated region
        $region21: #{tpu_custom_call.1} parent=11 // pred_check
          %p217 = pneg %p107
        $region22: #{tpu_custom_call.1} parent=11 // pred_check_branch
          %219 = sbr.rel (%p217) target = $region24
        $region23: #{tpu_custom_call.1} parent=11 // pred_region
          %221 = vsyncadd [#allocation3], 0
          %s222 = sshll.u32 %s3, 4
          %s223 = int_to_ptr.hbm [resolvable:$true] %s222
          %s224 = sshll.u32 [#allocation2], 4
          %s225 = int_to_ptr.vmem [resolvable:$true] %s224
          %230 = dma.hbm_to_vmem [thread:$0]  %s223, 2048, %s225, [#allocation3], 128, 128, 8
        $region24: #{tpu_custom_call.1} parent=11 // pred_fallthru
          _
        // Predicated region
        $region25: #{tpu_custom_call.1} parent=11 // pred_check
          %p231 = pneg %p128
        $region26: #{tpu_custom_call.1} parent=11 // pred_check_branch
          %233 = sbr.rel (%p231) target = $region28
        $region27: #{tpu_custom_call.1} parent=11 // pred_region
          _
        $region28: #{tpu_custom_call.1} parent=11 // pred_fallthru
          _
        // Predicated region
        $region29: #{tpu_custom_call.1} parent=11 // pred_check
          %p234 = pneg %p149
        $region30: #{tpu_custom_call.1} parent=11 // pred_check_branch
          %236 = sbr.rel (%p234) target = $region32
        $region31: #{tpu_custom_call.1} parent=11 // pred_region
          %238 = vsyncadd [#allocation6], 0
          %s239 = sshll.u32 %s5, 4
          %s240 = int_to_ptr.hbm [resolvable:$true] %s239
          %s241 = sshll.u32 [#allocation5], 4
          %s242 = int_to_ptr.vmem [resolvable:$true] %s241
          %247 = dma.hbm_to_vmem [thread:$0]  %s240, 4096, %s242, [#allocation6], 256, 256, 16
        $region32: #{tpu_custom_call.1} parent=11 // pred_fallthru
          _
        // Predicated region
        $region33: #{tpu_custom_call.1} parent=11 // pred_check
          %p248 = pneg %p170
        $region34: #{tpu_custom_call.1} parent=11 // pred_check_branch
          %250 = sbr.rel (%p248) target = $region36
        $region35: #{tpu_custom_call.1} parent=11 // pred_region
          _
        $region36: #{tpu_custom_call.1} parent=11 // pred_fallthru
          _
      $region12: #{tpu_custom_call.1} parent=5 // pred_fallthru
        _
      %p251 = scmp.lt.s32.totalorder %s18, 2
      // Predicated region
      $region37: #{tpu_custom_call.1} parent=5 // pred_check
        %p252 = pneg %p251
      $region38: #{tpu_custom_call.1} parent=5 // pred_check_branch
        %254 = sbr.rel (%p252) target = $region40
      $region39: #{tpu_custom_call.1} parent=5 // pred_region
        // Predicated region
        $region41: #{tpu_custom_call.1} parent=39 // pred_check
          %p255 = pneg %p38
        $region42: #{tpu_custom_call.1} parent=39 // pred_check_branch
          %257 = sbr.rel (%p255) target = $region44
        $region43: #{tpu_custom_call.1} parent=39 // pred_region
          %p258 = scmp.lt.s32.totalorder %s18, 1
          %s259 = scalar_select %p258, %s18, 1
          %s260 = smul.addr %s259, 8
          %s261 = scalar_lea.vmem %s0, %s260
        $region44: #{tpu_custom_call.1} parent=39 // pred_fallthru
          _
      $region40: #{tpu_custom_call.1} parent=5 // pred_fallthru
        _
      %p262 = scmp.le.s32.totalorder 1, %s18
      %p263 = scmp.lt.s32.totalorder %s18, 3
      %p264 = pnand %p262, %p263
      %p265 = pneg %p264
      // Predicated region
      $region45: #{tpu_custom_call.1} parent=5 // pred_check
        _
      $region46: #{tpu_custom_call.1} parent=5 // pred_check_branch
        %267 = sbr.rel (%p264) target = $region48
      $region47: #{tpu_custom_call.1} parent=5 // pred_region
        %s268 = ssub.s32 %s18, 1
        // Predicated region
        $region49: #{tpu_custom_call.1} parent=47 // pred_check
          %p269 = pneg %p107
        $region50: #{tpu_custom_call.1} parent=47 // pred_check_branch
          %271 = sbr.rel (%p269) target = $region52
        $region51: #{tpu_custom_call.1} parent=47 // pred_region
          %273 = dma.done [#allocation3], 2048
        $region52: #{tpu_custom_call.1} parent=47 // pred_fallthru
          _
        // Predicated region
        $region53: #{tpu_custom_call.1} parent=47 // pred_check
          %p274 = pneg %p149
        $region54: #{tpu_custom_call.1} parent=47 // pred_check_branch
          %276 = sbr.rel (%p274) target = $region56
        $region55: #{tpu_custom_call.1} parent=47 // pred_region
          %278 = dma.done [#allocation6], 4096
        $region56: #{tpu_custom_call.1} parent=47 // pred_fallthru
          _
        %p279 = scmp.lt.s32.totalorder %s23, 1
        %s280 = scalar_select %p279, %s23, 1
        %s281 = smul.addr %s280, 8
        %s282 = scalar_lea.vmem %s0, %s281
        %p283 = pneg %p44
        %p284 = pneg %p41
        %p285 = pneg %p65
        %p286 = pneg %p62
        %p287 = pneg %p86
        %p288 = pneg %p83
        %p289 = pneg %p107
        %p290 = pneg %p104
        %p291 = pneg %p128
        %p292 = pneg %p125
        %p293 = pneg %p149
        %p294 = pneg %p146
        %p295 = pneg %p170
        %p296 = pneg %p167
        %p297 = pneg %p196
        %p298 = pneg %p193
        %s299 = sand.u32 %s183, 1
        %s300 = scalar_lea.sflag [#allocation4], %s299
        %s301 = sand.u32 %s183, 1
        %s302 = smul.addr %s301, 16
        %s303 = scalar_lea.vmem [#allocation7], %s302
        %p304 = scmp.lt.s32.totalorder %s23, 1
        %s305 = scalar_select %p304, %s23, 1
        %s306 = smul.addr %s305, 8
        %s307 = scalar_lea.vmem %s0, %s306
        %v308 = vld [vmem:[%s307] sm:$0xff]
        %v309 = vld [vmem:[%s1] sm:$0xff]
        %v310 = vld [vmem:[%s2] sm:$0x1]
        %v312 = vperm.slane %v310, 0
        %vm314 = vcmask 64512
        %v316 = vsel %vm314, %v308, 0
        %318 = vmatpush.msra.mxu0 0.0
        %319 = vmatpush.msra.mxu0 0.0
        %320 = vmatpush.msra.mxu0 0.0
        %321 = vmatpush.msra.mxu0 0.0
        %322 = vmatpush.msra.mxu0 0.0
        %323 = vmatpush.msra.mxu0 0.0
        %324 = vmatpush.msra.mxu0 0.0
        %325 = vmatpush.msra.mxu0 0.0
        %326 = vmatpush.msra.mxu0 0.0
        %327 = vmatpush.msra.mxu0 0.0
        %328 = vmatpush.msra.mxu0 0.0
        %329 = vmatpush.msra.mxu0 0.0
        %330 = vmatpush.msra.mxu0 0.0
        %331 = vmatpush.msra.mxu0 0.0
        %332 = vmatpush.msra.mxu0 0.0
        %333 = vmatpush.msra.mxu0 %v309
        %334 = vmatmul.f32.gmra.mxu0 %v316
        %v335 = vpop.f32.mrf.mxu0
        %v336 = vadd.f32 %v312, %v335
        %337 = vdwg.mxu0
        %v338 = vmax.f32 %v336, 0.0
        %v339 = vld [vmem:[#allocation2] sm:$0xff]
        %v340 = vld [vmem:[#allocation2 + $0x8] sm:$0xff]
        %v341 = vld [vmem:[#allocation2 + $0x10] sm:$0xff]
        %v342 = vld [vmem:[#allocation2 + $0x18] sm:$0xff]
        %v343 = vld [vmem:[#allocation2 + $0x20] sm:$0xff]
        %v344 = vld [vmem:[#allocation2 + $0x28] sm:$0xff]
        %v345 = vld [vmem:[#allocation2 + $0x30] sm:$0xff]
        %v346 = vld [vmem:[#allocation2 + $0x38] sm:$0xff]
        %v347 = vld [vmem:[#allocation2 + $0x40] sm:$0xff]
        %v348 = vld [vmem:[#allocation2 + $0x48] sm:$0xff]
        %v349 = vld [vmem:[#allocation2 + $0x50] sm:$0xff]
        %v350 = vld [vmem:[#allocation2 + $0x58] sm:$0xff]
        %v351 = vld [vmem:[#allocation2 + $0x60] sm:$0xff]
        %v352 = vld [vmem:[#allocation2 + $0x68] sm:$0xff]
        %v353 = vld [vmem:[#allocation2 + $0x70] sm:$0xff]
        %v354 = vld [vmem:[#allocation2 + $0x78] sm:$0xff]
        %v355 = vld [vmem:[%s4] sm:$0x1]
        %v357 = vperm.slane %v355, 0
        %359 = vmatpush.msra.mxu0 %v354
        %360 = vmatpush.msra.mxu0 %v353
        %361 = vmatpush.msra.mxu0 %v352
        %362 = vmatpush.msra.mxu0 %v351
        %363 = vmatpush.msra.mxu0 %v350
        %364 = vmatpush.msra.mxu0 %v349
        %365 = vmatpush.msra.mxu0 %v348
        %366 = vmatpush.msra.mxu0 %v347
        %367 = vmatpush.msra.mxu0 %v346
        %368 = vmatpush.msra.mxu0 %v345
        %369 = vmatpush.msra.mxu0 %v344
        %370 = vmatpush.msra.mxu0 %v343
        %371 = vmatpush.msra.mxu0 %v342
        %372 = vmatpush.msra.mxu0 %v341
        %373 = vmatpush.msra.mxu0 %v340
        %374 = vmatpush.msra.mxu0 %v339
        %375 = vmatmul.f32.gmra.mxu0 %v338
        %v376 = vpop.f32.mrf.mxu0
        %v377 = vadd.f32 %v357, %v376
        %378 = vdwg.mxu0
        %v379 = vmax.f32 %v377, 0.0
        %v380 = vld [vmem:[#allocation5] sm:$0xff]
        %v381 = vld [vmem:[#allocation5 + $0x8] sm:$0xff]
        %v382 = vld [vmem:[#allocation5 + $0x10] sm:$0xff]
        %v383 = vld [vmem:[#allocation5 + $0x18] sm:$0xff]
        %v384 = vld [vmem:[#allocation5 + $0x20] sm:$0xff]
        %v385 = vld [vmem:[#allocation5 + $0x28] sm:$0xff]
        %v386 = vld [vmem:[#allocation5 + $0x30] sm:$0xff]
        %v387 = vld [vmem:[#allocation5 + $0x38] sm:$0xff]
        %v388 = vld [vmem:[#allocation5 + $0x40] sm:$0xff]
        %v389 = vld [vmem:[#allocation5 + $0x48] sm:$0xff]
        %v390 = vld [vmem:[#allocation5 + $0x50] sm:$0xff]
        %v391 = vld [vmem:[#allocation5 + $0x58] sm:$0xff]
        %v392 = vld [vmem:[#allocation5 + $0x60] sm:$0xff]
        %v393 = vld [vmem:[#allocation5 + $0x68] sm:$0xff]
        %v394 = vld [vmem:[#allocation5 + $0x70] sm:$0xff]
        %v395 = vld [vmem:[#allocation5 + $0x78] sm:$0xff]
        %v396 = vld [vmem:[#allocation5 + $0x80] sm:$0xff]
        %v397 = vld [vmem:[#allocation5 + $0x88] sm:$0xff]
        %v398 = vld [vmem:[#allocation5 + $0x90] sm:$0xff]
        %v399 = vld [vmem:[#allocation5 + $0x98] sm:$0xff]
        %v400 = vld [vmem:[#allocation5 + $0xa0] sm:$0xff]
        %v401 = vld [vmem:[#allocation5 + $0xa8] sm:$0xff]
        %v402 = vld [vmem:[#allocation5 + $0xb0] sm:$0xff]
        %v403 = vld [vmem:[#allocation5 + $0xb8] sm:$0xff]
        %v404 = vld [vmem:[#allocation5 + $0xc0] sm:$0xff]
        %v405 = vld [vmem:[#allocation5 + $0xc8] sm:$0xff]
        %v406 = vld [vmem:[#allocation5 + $0xd0] sm:$0xff]
        %v407 = vld [vmem:[#allocation5 + $0xd8] sm:$0xff]
        %v408 = vld [vmem:[#allocation5 + $0xe0] sm:$0xff]
        %v409 = vld [vmem:[#allocation5 + $0xe8] sm:$0xff]
        %v410 = vld [vmem:[#allocation5 + $0xf0] sm:$0xff]
        %v411 = vld [vmem:[#allocation5 + $0xf8] sm:$0xff]
        %v412 = vld [vmem:[%s6] sm:$0x3]
        %v414 = vperm.slane %v412, 0
        %v415 = vperm.slane %v412, 1
        %418 = vmatpush.msra.mxu0 %v410
        %419 = vmatpush.msra.mxu0 %v408
        %420 = vmatpush.msra.mxu0 %v406
        %421 = vmatpush.msra.mxu0 %v404
        %422 = vmatpush.msra.mxu0 %v402
        %423 = vmatpush.msra.mxu0 %v400
        %424 = vmatpush.msra.mxu0 %v398
        %425 = vmatpush.msra.mxu0 %v396
        %426 = vmatpush.msra.mxu0 %v394
        %427 = vmatpush.msra.mxu0 %v392
        %428 = vmatpush.msra.mxu0 %v390
        %429 = vmatpush.msra.mxu0 %v388
        %430 = vmatpush.msra.mxu0 %v386
        %431 = vmatpush.msra.mxu0 %v384
        %432 = vmatpush.msra.mxu0 %v382
        %433 = vmatpush.msra.mxu0 %v380
        %434 = vmatmul.f32.gmra.mxu0 %v379
        %v435 = vpop.f32.mrf.mxu0
        %v436 = vadd.f32 %v414, %v435
        %437 = vdwg.mxu0
        %438 = vmatpush.msra.mxu0 %v411
        %439 = vmatpush.msra.mxu0 %v409
        %440 = vmatpush.msra.mxu0 %v407
        %441 = vmatpush.msra.mxu0 %v405
        %442 = vmatpush.msra.mxu0 %v403
        %443 = vmatpush.msra.mxu0 %v401
        %444 = vmatpush.msra.mxu0 %v399
        %445 = vmatpush.msra.mxu0 %v397
        %446 = vmatpush.msra.mxu0 %v395
        %447 = vmatpush.msra.mxu0 %v393
        %448 = vmatpush.msra.mxu0 %v391
        %449 = vmatpush.msra.mxu0 %v389
        %450 = vmatpush.msra.mxu0 %v387
        %451 = vmatpush.msra.mxu0 %v385
        %452 = vmatpush.msra.mxu0 %v383
        %453 = vmatpush.msra.mxu0 %v381
        %454 = vmatmul.f32.gmra.mxu0 %v379
        %v455 = vpop.f32.mrf.mxu0
        %v456 = vadd.f32 %v415, %v455
        %457 = vdwg.mxu0
        %v458 = vxor.u32 %v436, 2147483648
        %v459 = vxor.u32 %v456, 2147483648
        %v460 = vmul.f32 %v458, 1.442695
        %v461 = vpow.pop %v460
        %v462 = vmul.f32 %v459, 1.442695
        %v463 = vpow.pop %v462
        %v464 = vadd.f32 %v461, 1.0
        %v465 = vadd.f32 %v463, 1.0
        %v466 = vrcp.pop %v464
        %v467 = vmul.f32 %v464, %v466
        %v468 = vsub.f32 1.0, %v467
        %v469 = vmul.f32 %v466, %v468
        %v470 = vadd.f32 %v466, %v469
        %vm471 = vweird.f32 %v464
        %vm472 = vweird.f32 %v466
        %vm473 = vmor %vm471, %vm472
        %v474 = vsel %vm473, %v466, %v470
        %v475 = vand.u32 2147483647, %v464
        %vm476 = vcmp.eq.f32.partialorder %v475, 8.507059e+37
        %v477 = vand.u32 %v464, 2147483648
        %v478 = vor.u32 1.1754944e-38, %v477
        %v479 = vsel %vm476, %v478, %v474
        %v480 = vmul.f32 1.0, %v479
        %v481 = vrcp.pop %v465
        %v482 = vmul.f32 %v465, %v481
        %v483 = vsub.f32 1.0, %v482
        %v484 = vmul.f32 %v481, %v483
        %v485 = vadd.f32 %v481, %v484
        %vm486 = vweird.f32 %v465
        %vm487 = vweird.f32 %v481
        %vm488 = vmor %vm486, %vm487
        %v489 = vsel %vm488, %v481, %v485
        %v490 = vand.u32 2147483647, %v465
        %vm491 = vcmp.eq.f32.partialorder %v490, 8.507059e+37
        %v492 = vand.u32 %v465, 2147483648
        %v493 = vor.u32 1.1754944e-38, %v492
        %v494 = vsel %vm491, %v493, %v489
        %v495 = vmul.f32 1.0, %v494
        %496 = vst [vmem:[%s303] sm:$0xff] %v480
        %497 = vst [vmem:[%s303 + $0x8] sm:$0xff] %v495
        %s498 = sand.u32 %s183, 1
        %s499 = scalar_lea.sflag [#allocation4], %s498
        %s500 = sand.u32 %s183, 1
        %s501 = smul.addr %s500, 16
        %s502 = scalar_lea.vmem [#allocation7], %s501
        // Predicated region
        $region57: #{tpu_custom_call.1} parent=47 // pred_check
          %p503 = pneg %p193
        $region58: #{tpu_custom_call.1} parent=47 // pred_check_branch
          %505 = sbr.rel (%p503) target = $region60
        $region59: #{tpu_custom_call.1} parent=47 // pred_region
          %507 = vsyncadd %s499, 0
          %s508 = smul.addr %s23, 2
          %s509 = smul.addr %s508, 8
          %s510 = scalar_lea.hbm %s7, %s509
          %s512 = sshll.u32 %s502, 4
          %s513 = int_to_ptr.vmem [resolvable:$true] %s512
          %s514 = sshll.u32 %s510, 4
          %s515 = int_to_ptr.hbm [resolvable:$true] %s514
          %517 = dma.vmem_to_hbm [thread:$0]  %s513, 256, %s515, %s499
        $region60: #{tpu_custom_call.1} parent=47 // pred_fallthru
          _
      $region48: #{tpu_custom_call.1} parent=5 // pred_fallthru
        _
      %p518 = scmp.le.s32.totalorder 2, %s18
      // Predicated region
      $region61: #{tpu_custom_call.1} parent=5 // pred_check
        %p519 = pneg %p518
      $region62: #{tpu_custom_call.1} parent=5 // pred_check_branch
        %521 = sbr.rel (%p519) target = $region64
      $region63: #{tpu_custom_call.1} parent=5 // pred_region
        %s522 = ssub.s32 %s18, 2
        // Predicated region
        $region65: #{tpu_custom_call.1} parent=63 // pred_check
          %p523 = pneg %p199
        $region66: #{tpu_custom_call.1} parent=63 // pred_check_branch
          %525 = sbr.rel (%p523) target = $region68
        $region67: #{tpu_custom_call.1} parent=63 // pred_region
          %s526 = sand.u32 %s184, 1
          %s527 = scalar_lea.sflag [#allocation4], %s526
          %s528 = sand.u32 %s184, 1
          %s529 = smul.addr %s528, 16
          %s530 = scalar_lea.vmem [#allocation7], %s529
          %532 = dma.done %s527, 256
        $region68: #{tpu_custom_call.1} parent=63 // pred_fallthru
          _
      $region64: #{tpu_custom_call.1} parent=5 // pred_fallthru
        _
    $region6: #{tpu_custom_call.1} parent=1 // loop_footer
      %s22 = sadd.s32 1, %s18
    $region7: #{tpu_custom_call.1} parent=1 // loop_footer_branch
      %17 = sbr.rel target = $region3
    $region8: #{tpu_custom_call.1} parent=1 // loop_exit
      _
    %533 = vsyncpa [#allocation3], 1
    %s534 = scalar_lea.sflag [#allocation3], 1
    %535 = vsyncpa %s534, 1
    %536 = vsyncpa [#allocation6], 1
    %537 = vsyncpa [#allocation4], 1
    %s538 = scalar_lea.sflag [#allocation4], 1
    %539 = vsyncpa %s538, 1

</llo_original>
